<compile_context>
chip_gen: v5e
topology: v5e:2x2
jax: 0.10.0
libtpu: 0.0.40
codegen_flags: <defaults>
</compile_context>

<pallas_src>
import functools

import jax
import jax.numpy as jnp
import numpy as np
from jax.experimental import pallas as pl
from jax.experimental.pallas import tpu as pltpu

DARK = 0.1
BRIGHT = 0.8
PAD = 0.5          # inert padding value: neither dark (<0.1) nor bright (>0.8)


def _round_up(n, m):
    return ((n + m - 1) // m) * m


def _remove_white_lines_kernel(x_ref, halo_ref, o_ref):
    """x_ref: (tile_h, W) image rows; halo_ref: (2, W) rows just above / below tile."""
    x = x_ref[...]                                   # (tile_h, W) f32
    th, w = x.shape

    above = halo_ref[0:1, :]                         # (1, W) row above this tile
    below = halo_ref[1:2, :]                         # (1, W) row below this tile

    row = jax.lax.broadcasted_iota(jnp.int32, (th, w), 0)
    col = jax.lax.broadcasted_iota(jnp.int32, (th, w), 1)

    # 4-neighbour values via XLU rotations. pltpu.roll only accepts non-negative
    # shifts, so "shift by -1" is a rotation by (size - 1). Wrapped rows at tile
    # seams are replaced by the halo rows; wrapped columns at the image edge are
    # simply masked out of the dark test (out-of-image neighbours are never dark).
    up    = jnp.where(row == 0,      above, pltpu.roll(x, 1,      axis=0))
    down  = jnp.where(row == th - 1, below, pltpu.roll(x, th - 1, axis=0))
    left_dark  = (pltpu.roll(x, 1,     axis=1) < DARK) & (col != 0)
    right_dark = (pltpu.roll(x, w - 1, axis=1) < DARK) & (col != w - 1)

    # binary_dilation(dark) with the default 4-connected cross structure (incl. centre).
    dilated = ((x < DARK) | (up < DARK) | (down < DARK) | left_dark | right_dark)
    target = (x > BRIGHT) & dilated
    o_ref[...] = jnp.where(target, 0.0, x)


def _choose_tile_h(H, budget_rows):
    """Pick a row-tile height: multiple of 8, within the VMEM budget, preferring a
    divisor of H (no padding) and >= 2 grid steps (v7x megacore)."""
    if H % 8 == 0:
        cands = [t for t in range(8, min(budget_rows, H) + 1, 8) if H % t == 0]
        two_plus = [t for t in cands if H // t >= 2]
        pool = two_plus or cands
        if pool:
            return max(pool)
    # Fallback: aim for ~2 tiles and pad H up to a multiple of tile_h.
    t = min(budget_rows, _round_up(max(H // 2, 1), 8))
    return max(8, t)


@functools.partial(jax.jit, static_argnames=("block_bytes",))
def remove_white_lines(img, block_bytes=4 * 2 ** 20):
    """img: (1, H, W) float32 -> (1, H, W) float32, matching the torch module."""
    x = img[0]
    H, W = x.shape
    itemsize = jnp.dtype(x.dtype).itemsize

    # ~4 MiB per block (double-buffered in + out stays well under every chip's
    # scoped-VMEM budget, incl. v7x's 64 MiB physical VMEM).
    # TODO(synk): add a second ("parallel") width grid axis with a 1-column halo for
    # extremely wide images where an 8-row block would still exceed the VMEM budget.
    budget_rows = max(8, (block_bytes // (W * itemsize)) // 8 * 8)
    tile_h = _choose_tile_h(H, budget_rows)
    Hp = _round_up(H, tile_h)
    num_tiles = Hp // tile_h

    # Pad rows only when tile_h does not divide H (inert PAD value).
    x_src = x if Hp == H else jnp.pad(x, ((0, Hp - H), (0, 0)), constant_values=PAD)

    # Per-tile halo rows: the row just above / below each tile, PAD at image edges.
    # Built by strided slicing (a handful of rows) -- no full-image pad pass.
    pad_row = jnp.full((1, W), PAD, x.dtype)
    if num_tiles > 1:
        above = jnp.concatenate([pad_row, x_src[tile_h - 1:Hp - 1:tile_h]], axis=0)
        below = jnp.concatenate([x_src[tile_h::tile_h], pad_row], axis=0)
    else:
        above = pad_row
        below = pad_row
    halo = jnp.stack([above, below], axis=1)          # (num_tiles, 2, W)

    out = pl.pallas_call(
        _remove_white_lines_kernel,
        out_shape=jax.ShapeDtypeStruct((Hp, W), x.dtype),
        grid=(num_tiles,),
        in_specs=[
            pl.BlockSpec((tile_h, W), lambda i: (i, 0)),
            pl.BlockSpec((None, 2, W), lambda i: (i, 0, 0)),
        ],
        out_specs=pl.BlockSpec((tile_h, W), lambda i: (i, 0)),
        compiler_params=pltpu.CompilerParams(
            dimension_semantics=("parallel",),
            vmem_limit_bytes=32 * 2 ** 20),
    )(x_src, halo)

    if Hp != H:
        out = out[:H]
    return out[None]


def _reference(img):
    """Pure-numpy reference of the torch/scipy forward pass."""
    x = np.asarray(img[0])
    dark = x < DARK
    bright = x > BRIGHT
    dil = dark.copy()
    dil[1:, :] |= dark[:-1, :]
    dil[:-1, :] |= dark[1:, :]
    dil[:, 1:] |= dark[:, :-1]
    dil[:, :-1] |= dark[:, 1:]
    return np.where(bright & dil, 0.0, x)[None]


if __name__ == "__main__":
    key = jax.random.PRNGKey(0)
    k1, k2, k3 = jax.random.split(key, 3)

    # Module-shaped input (1, H, W): exercises the 2-tile path (tile_h = 8).
    img1 = jax.random.uniform(k1, (1, 16, 16), dtype=jnp.float32)
    out1 = jax.block_until_ready(remove_white_lines(img1))
    assert out1.shape == img1.shape and out1.dtype == img1.dtype
    assert np.allclose(np.asarray(out1), _reference(img1)), "mismatch (16x16)"

    # Multi-tile with divisor tile height (tile_h = 24, no padding at all).
    img2 = jax.random.uniform(k2, (1, 48, 16), dtype=jnp.float32)
    out2 = jax.block_until_ready(remove_white_lines(img2))
    assert out2.shape == img2.shape and out2.dtype == img2.dtype
    assert np.allclose(np.asarray(out2), _reference(img2)), "mismatch (48x16)"

    # Ragged H (20 % 8 != 0): exercises the row-pad fallback and lane-dense W=128.
    img3 = jax.random.uniform(k3, (1, 20, 128), dtype=jnp.float32)
    out3 = jax.block_until_ready(remove_white_lines(img3))
    assert out3.shape == img3.shape and out3.dtype == img3.dtype
    assert np.allclose(np.asarray(out3), _reference(img3)), "mismatch (20x128)"

    print("KERNEL_OK")
</pallas_src>

<mosaic_0001>
module attributes {stable_mosaic.version = 11 : i64} {
  func.func @_remove_white_lines_kernel(%arg0: i32, %arg1: memref<8x16xf32, #tpu.memory_space<vmem>>, %arg2: memref<1x2x16xf32, #tpu.memory_space<vmem>>, %arg3: memref<8x16xf32, #tpu.memory_space<vmem>>) attributes {dimension_semantics = [#tpu.dimension_semantics<parallel>], iteration_bounds = array<i64: 2>, scalar_prefetch = 0 : i64, scratch_operands = 0 : i64, tpu.core_type = #tpu.core_type<tc>, window_params = [{transform_indices = @transform_0, window_bounds = array<i64: 8, 16>}, {transform_indices = @transform_1, window_bounds = array<i64: 1, 2, 16>}, {transform_indices = @transform_2, window_bounds = array<i64: 8, 16>}]} {
    %c0 = arith.constant 0 : index
    %c0_0 = arith.constant 0 : index
    %0 = vector.load %arg1[%c0, %c0_0] : memref<8x16xf32, #tpu.memory_space<vmem>>, vector<8x16xf32>
    %c0_1 = arith.constant 0 : index
    %c0_2 = arith.constant 0 : index
    %c0_3 = arith.constant 0 : index
    %1 = vector.load %arg2[%c0_1, %c0_2, %c0_3] : memref<1x2x16xf32, #tpu.memory_space<vmem>>, vector<1x1x16xf32>
    %2 = vector.shape_cast %1 : vector<1x1x16xf32> to vector<1x16xf32>
    %c0_4 = arith.constant 0 : index
    %c1 = arith.constant 1 : index
    %c0_5 = arith.constant 0 : index
    %3 = vector.load %arg2[%c0_4, %c1, %c0_5] : memref<1x2x16xf32, #tpu.memory_space<vmem>>, vector<1x1x16xf32>
    %4 = vector.shape_cast %3 : vector<1x1x16xf32> to vector<1x16xf32>
    %5 = tpu.iota {dimensions = array<i32: 0>} : vector<8x16xi32>
    %6 = tpu.iota {dimensions = array<i32: 1>} : vector<8x16xi32>
    %c0_i32 = arith.constant 0 : i32
    %7 = vector.broadcast %c0_i32 : i32 to vector<8x16xi32>
    %8 = arith.cmpi eq, %5, %7 : vector<8x16xi32>
    %c1_i32 = arith.constant 1 : i32
    %9 = tpu.dynamic_rotate %0 by %c1_i32 dim 0 : vector<8x16xf32>, i32 -> vector<8x16xf32>
    %10 = vector.shape_cast %2 : vector<1x16xf32> to vector<1x16xf32>
    %11 = vector.broadcast %10 : vector<1x16xf32> to vector<8x16xf32>
    %12 = arith.select %8, %11, %9 : vector<8x16xi1>, vector<8x16xf32>
    %c7_i32 = arith.constant 7 : i32
    %13 = vector.broadcast %c7_i32 : i32 to vector<8x16xi32>
    %14 = arith.cmpi eq, %5, %13 : vector<8x16xi32>
    %c7_i32_6 = arith.constant 7 : i32
    %15 = tpu.dynamic_rotate %0 by %c7_i32_6 dim 0 : vector<8x16xf32>, i32 -> vector<8x16xf32>
    %16 = vector.shape_cast %4 : vector<1x16xf32> to vector<1x16xf32>
    %17 = vector.broadcast %16 : vector<1x16xf32> to vector<8x16xf32>
    %18 = arith.select %14, %17, %15 : vector<8x16xi1>, vector<8x16xf32>
    %c1_i32_7 = arith.constant 1 : i32
    %19 = tpu.dynamic_rotate %0 by %c1_i32_7 dim 1 : vector<8x16xf32>, i32 -> vector<8x16xf32>
    %cst = arith.constant 1.000000e-01 : f32
    %20 = vector.broadcast %cst : f32 to vector<8x16xf32>
    %21 = arith.cmpf olt, %19, %20 : vector<8x16xf32>
    %c0_i32_8 = arith.constant 0 : i32
    %22 = vector.broadcast %c0_i32_8 : i32 to vector<8x16xi32>
    %23 = arith.cmpi ne, %6, %22 : vector<8x16xi32>
    %24 = arith.andi %21, %23 : vector<8x16xi1>
    %c15_i32 = arith.constant 15 : i32
    %25 = tpu.dynamic_rotate %0 by %c15_i32 dim 1 : vector<8x16xf32>, i32 -> vector<8x16xf32>
    %cst_9 = arith.constant 1.000000e-01 : f32
    %26 = vector.broadcast %cst_9 : f32 to vector<8x16xf32>
    %27 = arith.cmpf olt, %25, %26 : vector<8x16xf32>
    %c15_i32_10 = arith.constant 15 : i32
    %28 = vector.broadcast %c15_i32_10 : i32 to vector<8x16xi32>
    %29 = arith.cmpi ne, %6, %28 : vector<8x16xi32>
    %30 = arith.andi %27, %29 : vector<8x16xi1>
    %cst_11 = arith.constant 1.000000e-01 : f32
    %31 = vector.broadcast %cst_11 : f32 to vector<8x16xf32>
    %32 = arith.cmpf olt, %0, %31 : vector<8x16xf32>
    %cst_12 = arith.constant 1.000000e-01 : f32
    %33 = vector.broadcast %cst_12 : f32 to vector<8x16xf32>
    %34 = arith.cmpf olt, %12, %33 : vector<8x16xf32>
    %35 = arith.ori %32, %34 : vector<8x16xi1>
    %cst_13 = arith.constant 1.000000e-01 : f32
    %36 = vector.broadcast %cst_13 : f32 to vector<8x16xf32>
    %37 = arith.cmpf olt, %18, %36 : vector<8x16xf32>
    %38 = arith.ori %35, %37 : vector<8x16xi1>
    %39 = arith.ori %38, %24 : vector<8x16xi1>
    %40 = arith.ori %39, %30 : vector<8x16xi1>
    %cst_14 = arith.constant 8.000000e-01 : f32
    %41 = vector.broadcast %cst_14 : f32 to vector<8x16xf32>
    %42 = arith.cmpf ogt, %0, %41 : vector<8x16xf32>
    %43 = arith.andi %42, %40 : vector<8x16xi1>
    %cst_15 = arith.constant 0.000000e+00 : f32
    %44 = vector.broadcast %cst_15 : f32 to vector<8x16xf32>
    %45 = arith.select %43, %44, %0 : vector<8x16xi1>, vector<8x16xf32>
    %c0_16 = arith.constant 0 : index
    %c0_17 = arith.constant 0 : index
    %46 = vector.load %arg3[%c0_16, %c0_17] : memref<8x16xf32, #tpu.memory_space<vmem>>, vector<8x16xf32>
    tpu.vector_store %arg3[%c0_16, %c0_17], %45 {strides = array<i32>} : memref<8x16xf32, #tpu.memory_space<vmem>>, vector<8x16xf32>,
    return
  }
  func.func @transform_0(%arg0: i32) -> (i32, i32) {
    %c0_i32 = arith.constant 0 : i32
    %c0_i32_0 = arith.constant 0 : i32
    return %arg0, %c0_i32 : i32, i32
  }
  func.func @transform_1(%arg0: i32) -> (i32, i32, i32) {
    %c0_i32 = arith.constant 0 : i32
    %c0_i32_0 = arith.constant 0 : i32
    %c0_i32_1 = arith.constant 0 : i32
    return %arg0, %c0_i32, %c0_i32_0 : i32, i32, i32
  }
  func.func @transform_2(%arg0: i32) -> (i32, i32) {
    %c0_i32 = arith.constant 0 : i32
    %c0_i32_0 = arith.constant 0 : i32
    return %arg0, %c0_i32 : i32, i32
  }
}

</mosaic_0001>

<llo_original>
// kernel: remove_white_lines.1
$region0: #{remove_white_lines.1}
  #allocation0 [shape = 'u32[]', space=smem, size = 0x4, offset = 0x4, fixed_abs, tag = 'smem constant byte address 0x4 - core index']
  #allocation1 [shape = 'u32[72,128]{1,0:T(1,128)}', space=vmem, size = 0x9000, scoped, tag = 'internal scratch']
  %s0 = inlined_call_operand.vmem [shape: f32[16,16], index: 0, kind: input, shape index: {}]
  %s1 = inlined_call_operand.vmem [shape: f32[2,2,16], index: 1, kind: input, shape index: {}]
  %s2 = inlined_call_operand.hbm [shape: f32[16,16], index: 2, kind: output, shape index: {}]
  %s3 = sld [smem:[#allocation0]]
  $region41: #{remove_white_lines.1} parent=0
    _
  %s5 = ssub.s32 1, %s3
  %s6 = scalar_select 0, %s5, %s3
  $region1: #{remove_white_lines.1} parent=0
    #allocation2 [shape = 'u8[8192]{0}', space=vmem, size = 0x2000, scoped, tag = 'output window, operand 0']
    #allocation3 [shape = 's32[2]{0}', space=sflag, size = 0x8, scoped, tag = 'scoped memory for remove_white_lines.1']
    %7 = vsyncpa [#allocation3], 0
    %s8 = scalar_lea.sflag [#allocation3], 1
    %9 = vsyncpa %s8, 0
    loop: start=0, step=1, limit=4
    $region2: #{remove_white_lines.1} parent=1 // loop_pre_header
      _
    $region3: #{remove_white_lines.1} parent=1 // loop_header
      %s11 = sphi 0, %s15
      %p12 = scmp.ge.s32.totalorder %s11, 4
      %s21 = sphi 0, %s23
      %s24 = sphi 0, %s21
      %s25 = sphi 0, %s24
      %s41 = sphi 0, %s25
      %s47 = sphi 0, %s49
      %s50 = sphi 0, %s47
      %s51 = sphi 0, %s50
      %s67 = sphi 0, %s51
      %s73 = sphi 0, %s75
      %s76 = sphi 0, %s73
      %s77 = sphi 0, %s76
      %s93 = sphi 0, %s77
    $region4: #{remove_white_lines.1} parent=1 // loop_header_branch
      %14 = sbr.rel (%p12) target = $region8
    $region5: #{remove_white_lines.1} parent=1 // loop_body
      %s16 = ssub.s32 %s11, 1
      %s17 = ssub.s32 %s11, 2
      %s18 = sadd.s32 %s11, 1
      %s19 = ssub.s32 %s11, %s18
      %p20 = scmp.eq.s32.totalorder %s19, 0
      %s22 = sadd.s32 %s21, 1
      %s23 = scalar_select %p20, %s21, %s22
      %p26 = pneg %p20
      %p27 = scmp.eq.s32.totalorder %s11, 1
      %p28 = por %p26, %p27
      %p29 = scmp.ne.s32.totalorder %s21, %s24
      %p30 = scmp.eq.s32.totalorder %s11, 0
      %p31 = por %p29, %p30
      %p32 = scmp.ne.s32.totalorder %s21, %s24
      %p33 = scmp.eq.s32.totalorder %s16, 1
      %p34 = por %p32, %p33
      %p35 = scmp.ne.s32.totalorder %s24, %s25
      %p36 = scmp.eq.s32.totalorder %s16, 0
      %p37 = por %p35, %p36
      %p38 = scmp.ne.s32.totalorder %s24, %s25
      %p39 = scmp.eq.s32.totalorder %s17, 1
      %p40 = por %p38, %p39
      %p42 = scmp.ne.s32.totalorder %s25, %s41
      %p43 = scmp.eq.s32.totalorder %s17, 0
      %p44 = por %p42, %p43
      %s45 = ssub.s32 %s11, %s18
      %p46 = scmp.eq.s32.totalorder %s45, 0
      %s48 = sadd.s32 %s47, 1
      %s49 = scalar_select %p46, %s47, %s48
      %p52 = pneg %p46
      %p53 = scmp.eq.s32.totalorder %s11, 1
      %p54 = por %p52, %p53
      %p55 = scmp.ne.s32.totalorder %s47, %s50
      %p56 = scmp.eq.s32.totalorder %s11, 0
      %p57 = por %p55, %p56
      %p58 = scmp.ne.s32.totalorder %s47, %s50
      %p59 = scmp.eq.s32.totalorder %s16, 1
      %p60 = por %p58, %p59
      %p61 = scmp.ne.s32.totalorder %s50, %s51
      %p62 = scmp.eq.s32.totalorder %s16, 0
      %p63 = por %p61, %p62
      %p64 = scmp.ne.s32.totalorder %s50, %s51
      %p65 = scmp.eq.s32.totalorder %s17, 1
      %p66 = por %p64, %p65
      %p68 = scmp.ne.s32.totalorder %s51, %s67
      %p69 = scmp.eq.s32.totalorder %s17, 0
      %p70 = por %p68, %p69
      %s71 = ssub.s32 %s11, %s18
      %p72 = scmp.eq.s32.totalorder %s71, 0
      %s74 = sadd.s32 %s73, 1
      %s75 = scalar_select %p72, %s73, %s74
      %p78 = pneg %p72
      %p79 = scmp.eq.s32.totalorder %s11, 1
      %p80 = por %p78, %p79
      %p81 = scmp.ne.s32.totalorder %s73, %s76
      %p82 = scmp.eq.s32.totalorder %s11, 0
      %p83 = por %p81, %p82
      %p84 = scmp.ne.s32.totalorder %s73, %s76
      %p85 = scmp.eq.s32.totalorder %s16, 1
      %p86 = por %p84, %p85
      %p87 = scmp.ne.s32.totalorder %s76, %s77
      %p88 = scmp.eq.s32.totalorder %s16, 0
      %p89 = por %p87, %p88
      %p90 = scmp.ne.s32.totalorder %s76, %s77
      %p91 = scmp.eq.s32.totalorder %s17, 1
      %p92 = por %p90, %p91
      %p94 = scmp.ne.s32.totalorder %s77, %s93
      %p95 = scmp.eq.s32.totalorder %s17, 0
      %p96 = por %p94, %p95
      %p97 = scmp.le.s32.totalorder 1, %s11
      %p98 = scmp.lt.s32.totalorder %s11, 3
      %p99 = pnand %p97, %p98
      %p100 = pneg %p99
      // Predicated region
      $region9: #{remove_white_lines.1} parent=5 // pred_check
        _
      $region10: #{remove_white_lines.1} parent=5 // pred_check_branch
        %102 = sbr.rel (%p99) target = $region12
      $region11: #{remove_white_lines.1} parent=5 // pred_region
        %s103 = ssub.s32 %s11, 1
      $region12: #{remove_white_lines.1} parent=5 // pred_fallthru
        _
      %p104 = scmp.lt.s32.totalorder %s11, 2
      // Predicated region
      $region13: #{remove_white_lines.1} parent=5 // pred_check
        %p105 = pneg %p104
      $region14: #{remove_white_lines.1} parent=5 // pred_check_branch
        %107 = sbr.rel (%p105) target = $region16
      $region15: #{remove_white_lines.1} parent=5 // pred_region
        // Predicated region
        $region17: #{remove_white_lines.1} parent=15 // pred_check
          %p108 = pneg %p31
        $region18: #{remove_white_lines.1} parent=15 // pred_check_branch
          %110 = sbr.rel (%p108) target = $region20
        $region19: #{remove_white_lines.1} parent=15 // pred_region
          %p111 = scmp.lt.s32.totalorder %s11, 1
          %s112 = scalar_select %p111, %s11, 1
          %s113 = smul.addr %s112, 8
          %s114 = scalar_lea.vmem %s0, %s113
        $region20: #{remove_white_lines.1} parent=15 // pred_fallthru
          _
        // Predicated region
        $region21: #{remove_white_lines.1} parent=15 // pred_check
          %p115 = pneg %p57
        $region22: #{remove_white_lines.1} parent=15 // pred_check_branch
          %117 = sbr.rel (%p115) target = $region24
        $region23: #{remove_white_lines.1} parent=15 // pred_region
          %p118 = scmp.lt.s32.totalorder %s11, 1
          %s119 = scalar_select %p118, %s11, 1
          %s120 = smul.addr %s119, 2
          %s121 = scalar_lea.vmem %s1, %s120
        $region24: #{remove_white_lines.1} parent=15 // pred_fallthru
          _
      $region16: #{remove_white_lines.1} parent=5 // pred_fallthru
        _
      %p122 = scmp.le.s32.totalorder 1, %s11
      %p123 = scmp.lt.s32.totalorder %s11, 3
      %p124 = pnand %p122, %p123
      %p125 = pneg %p124
      // Predicated region
      $region25: #{remove_white_lines.1} parent=5 // pred_check
        _
      $region26: #{remove_white_lines.1} parent=5 // pred_check_branch
        %127 = sbr.rel (%p124) target = $region28
      $region27: #{remove_white_lines.1} parent=5 // pred_region
        %s128 = ssub.s32 %s11, 1
        %p129 = scmp.lt.s32.totalorder %s16, 1
        %s130 = scalar_select %p129, %s16, 1
        %s131 = smul.addr %s130, 8
        %s132 = scalar_lea.vmem %s0, %s131
        %p133 = pneg %p37
        %p134 = pneg %p34
        %p135 = scmp.lt.s32.totalorder %s16, 1
        %s136 = scalar_select %p135, %s16, 1
        %s137 = smul.addr %s136, 2
        %s138 = scalar_lea.vmem %s1, %s137
        %p139 = pneg %p63
        %p140 = pneg %p60
        %p141 = pneg %p89
        %p142 = pneg %p86
        %s143 = sand.u32 %s76, 1
        %s144 = scalar_lea.sflag [#allocation3], %s143
        %s145 = sand.u32 %s76, 1
        %s146 = smul.addr %s145, 8
        %s147 = scalar_lea.vmem [#allocation2], %s146
        %p148 = scmp.lt.s32.totalorder %s16, 1
        %s149 = scalar_select %p148, %s16, 1
        %s150 = smul.addr %s149, 8
        %s151 = scalar_lea.vmem %s0, %s150
        %p152 = scmp.lt.s32.totalorder %s16, 1
        %s153 = scalar_select %p152, %s16, 1
        %s154 = smul.addr %s153, 2
        %s155 = scalar_lea.vmem %s1, %s154
        %v156 = vld [vmem:[%s151] sm:$0xff]
        %v157 = vld [vmem:[%s155] sm:$0x1]
        %v158 = vld [vmem:[%s155 + $0x1] sm:$0x1]
        %v159 = vlaneseq
        %v160 = vshrl.u32 %v159, 7
        %v161 = vlaneseq
        %v162 = vand.u32 %v161, 127
        %vm163 = vcmp.eq.s32.totalorder %v160, 0
        %v164 = vrot.slane %v156, 7
        %v165 = vperm.slane %v157, 0
        %v166 = vsel %vm163, %v165, %v164
        %vm167 = vcmp.eq.s32.totalorder %v160, 7
        %v168 = vrot.slane %v156, 1
        %v169 = vperm.slane %v158, 0
        %v170 = vsel %vm167, %v169, %v168
        %vm171 = vcmask 1047680
        %172 = vrot.lane.b32.xlu0 %v156, 16
        %v173 = vpop.permute.xlu0 %172
        %v174 = vsel %vm171, %v173, %v156
        %175 = vrot.lane.b32.xlu0 %v174, 16
        %v176 = vpop.permute.xlu0 %175
        %v177 = vsel %vm171, %v176, %v156
        %vm178 = vcmp.lt.f32.partialorder %v177, 0.1
        %vm179 = vcmp.ne.s32.totalorder %v162, 0
        %v180 = vsel %vm179, 1, 0
        %181 = vrot.lane.b32.xlu0 %v180, 15
        %v182 = vpop.permute.xlu0 %181
        %vm183 = vcmp.ne.s32.totalorder %v182, 0
        %vm184 = vmand %vm178, %vm183
        %vm185 = vcmp.ne.s32.totalorder %v162, 15
        %v186 = vsel %vm185, 1, 0
        %187 = vrot.lane.b32.xlu0 %v186, 1
        %v188 = vpop.permute.xlu0 %187
        %vm189 = vcmp.ne.s32.totalorder %v188, 0
        %vm190 = vmand %vm178, %vm189
        %vm191 = vcmp.lt.f32.partialorder %v156, 0.1
        %vm192 = vcmp.lt.f32.partialorder %v166, 0.1
        %vm193 = vmor %vm191, %vm192
        %vm194 = vcmp.lt.f32.partialorder %v170, 0.1
        %vm195 = vmor %vm193, %vm194
        %v196 = vsel %vm184, 1, 0
        %197 = vrot.lane.b32.xlu0 %v196, 113
        %v198 = vpop.permute.xlu0 %197
        %vm199 = vcmp.ne.s32.totalorder %v198, 0
        %vm200 = vmor %vm195, %vm199
        %v201 = vsel %vm190, 1, 0
        %202 = vrot.lane.b32.xlu0 %v201, 127
        %v203 = vpop.permute.xlu0 %202
        %vm204 = vcmp.ne.s32.totalorder %v203, 0
        %vm205 = vmor %vm200, %vm204
        %vm206 = vcmp.gt.f32.partialorder %v156, 0.8
        %vm207 = vmand %vm206, %vm205
        %v208 = vsel %vm207, 0.0, %v156
        %vm209 = vcmask 130048
        %210 = vst.msk [vmem:[%s147] sm:$0xff] %vm209, %v208
        %s211 = sand.u32 %s76, 1
        %s212 = scalar_lea.sflag [#allocation3], %s211
        %s213 = sand.u32 %s76, 1
        %s214 = smul.addr %s213, 8
        %s215 = scalar_lea.vmem [#allocation2], %s214
        // Predicated region
        $region29: #{remove_white_lines.1} parent=27 // pred_check
          %p216 = pneg %p86
        $region30: #{remove_white_lines.1} parent=27 // pred_check_branch
          %218 = sbr.rel (%p216) target = $region32
        $region31: #{remove_white_lines.1} parent=27 // pred_region
          %220 = vsyncadd %s212, 0
          %s221 = smul.addr %s16, 8
          %s222 = scalar_lea.hbm %s2, %s221
          %s224 = sshll.u32 %s215, 4
          %s225 = int_to_ptr.vmem [resolvable:$true] %s224
          %s226 = sshll.u32 %s222, 4
          %s227 = int_to_ptr.hbm [resolvable:$true] %s226
          %229 = dma.vmem_to_hbm [thread:$0]  %s225, 128, %s227, %s212
        $region32: #{remove_white_lines.1} parent=27 // pred_fallthru
          _
      $region28: #{remove_white_lines.1} parent=5 // pred_fallthru
        _
      %p230 = scmp.le.s32.totalorder 2, %s11
      // Predicated region
      $region33: #{remove_white_lines.1} parent=5 // pred_check
        %p231 = pneg %p230
      $region34: #{remove_white_lines.1} parent=5 // pred_check_branch
        %233 = sbr.rel (%p231) target = $region36
      $region35: #{remove_white_lines.1} parent=5 // pred_region
        %s234 = ssub.s32 %s11, 2
        // Predicated region
        $region37: #{remove_white_lines.1} parent=35 // pred_check
          %p235 = pneg %p92
        $region38: #{remove_white_lines.1} parent=35 // pred_check_branch
          %237 = sbr.rel (%p235) target = $region40
        $region39: #{remove_white_lines.1} parent=35 // pred_region
          %s238 = sand.u32 %s77, 1
          %s239 = scalar_lea.sflag [#allocation3], %s238
          %s240 = sand.u32 %s77, 1
          %s241 = smul.addr %s240, 8
          %s242 = scalar_lea.vmem [#allocation2], %s241
          %244 = dma.done %s239, 128
        $region40: #{remove_white_lines.1} parent=35 // pred_fallthru
          _
      $region36: #{remove_white_lines.1} parent=5 // pred_fallthru
        _
    $region6: #{remove_white_lines.1} parent=1 // loop_footer
      %s15 = sadd.s32 1, %s11
    $region7: #{remove_white_lines.1} parent=1 // loop_footer_branch
      %10 = sbr.rel target = $region3
    $region8: #{remove_white_lines.1} parent=1 // loop_exit
      _
    %245 = vsyncpa [#allocation3], 1
    %s246 = scalar_lea.sflag [#allocation3], 1
    %247 = vsyncpa %s246, 1

</llo_original>
